<compile_context>
chip_gen: v7x
topology: tpu7x:2x2x1
jax: 0.10.0
libtpu: 0.0.40
codegen_flags: <defaults>
</compile_context>

<pallas_src>
import jax
import jax.numpy as jnp
from jax.experimental import pallas as pl
from jax.experimental.pallas import tpu as pltpu  # noqa: F401  (TPU backend)


# ----------------------------------------------------------------------------- kernel
def ar_decoder_kernel(z_ref, c_ref, w_ref, b_ref, out_ref):
    """Fused 3-cell LSTM step.

    z_ref   [B, 128]   packed ( kps | h0 | h1 | h2 | zero-pad )
    c_ref   [B, 128]   packed ( c0  | c1 | c2  | zero-pad )
    w_ref   [128, 512] fused block weight, gate-group-major (i|f|g|o, each 128 wide)
    b_ref   [1, 512]   fused bias (same layout)
    out_ref [B, 256]   ( h0n|h1n|h2n|pad  |  c0n|c1n|c2n|pad )
    """
    G = c_ref.shape[1]  # 128 — padded gate-group width

    # One MXU push produces all 12 gates for all three cells.
    gates = (jnp.dot(z_ref[...], w_ref[...], preferred_element_type=jnp.float32)
             + b_ref[...])

    # 128-lane-aligned group slices: no cross-tile lane moves.
    i = jax.nn.sigmoid(gates[:, 0 * G:1 * G])
    f = jax.nn.sigmoid(gates[:, 1 * G:2 * G])
    g = jnp.tanh(gates[:, 2 * G:3 * G])
    o = jax.nn.sigmoid(gates[:, 3 * G:4 * G])

    c_new = f * c_ref[...] + i * g          # all three cells at once
    h_new = o * jnp.tanh(c_new)

    out_ref[:, 0:G] = h_new.astype(out_ref.dtype)
    out_ref[:, G:2 * G] = c_new.astype(out_ref.dtype)


def _full_spec(shape):
    return pl.BlockSpec(shape, lambda: (0,) * len(shape))


# ------------------------------------------------------------------- host-side fusion
def fuse_params(p, kps_size, hidden, *, group=128, zin=128):
    """Build the fused block weight/bias once on the host.

    Row layout of z (contraction axis, padded to `zin`):
        [ kps (K) | h0 (H) | h1 (H) | h2 (H) | zeros ]
    Column layout (padded gate groups of width `group`):
        [ i_c0 i_c1 i_c2 pad | f_c0 f_c1 f_c2 pad | g... | o... ]
    """
    K, H, G = kps_size, hidden, group
    assert 3 * H <= G and K + 3 * H <= zin

    # Fold tgt_emb into lstm1:  (kps @ w_emb + b_emb) @ w_ih1
    w_ih1p = p["w_emb"] @ p["w_ih1"]           # [K, 4H]
    b1p = p["b1"] + p["b_emb"] @ p["w_ih1"]    # [1, 4H]

    W = jnp.zeros((zin, 4 * G), jnp.float32)
    b = jnp.zeros((1, 4 * G), jnp.float32)

    def place_w(W, row0, w_block, cell):
        rows = w_block.shape[0]
        for gi in range(4):                     # PyTorch gate order i, f, g, o
            col = gi * G + cell * H
            W = W.at[row0:row0 + rows, col:col + H].set(
                w_block[:, gi * H:(gi + 1) * H])
        return W

    def place_b(b, b_block, cell):
        for gi in range(4):
            col = gi * G + cell * H
            b = b.at[0, col:col + H].set(b_block[0, gi * H:(gi + 1) * H])
        return b

    # cell 0: input = kps (rows 0:K), hidden = h0 (rows K:K+H)
    W = place_w(W, 0, w_ih1p, 0)
    W = place_w(W, K, p["w_hh1"], 0)
    b = place_b(b, b1p, 0)
    # cell 1: input = OLD h0 (rows K:K+H), hidden = h1 (rows K+H:K+2H)
    W = place_w(W, K, p["w_ih2"], 1)
    W = place_w(W, K + H, p["w_hh2"], 1)
    b = place_b(b, p["b2"], 1)
    # cell 2: input = OLD h1 (rows K+H:K+2H), hidden = h2 (rows K+2H:K+3H)
    W = place_w(W, K + H, p["w_ih3"], 2)
    W = place_w(W, K + 2 * H, p["w_hh3"], 2)
    b = place_b(b, p["b3"], 2)

    # NOTE(v6e/v7x): W could be cast to bf16 (keep f32 accumulate) to halve DMA bytes;
    # kept f32 here to preserve the 1e-5 parity tolerance.
    return W, b


# ---------------------------------------------------------------------------- wrapper
@jax.jit
def ar_decoder_forward(kps, vec_h, vec_c, W, b):
    """Pallas implementation of AR_Decoder.forward.

    kps: [B, K]; vec_h/vec_c: lists of 3 arrays [B, H].
    Returns (vec_h2, vec_h_new, vec_c_new) like the PyTorch module.
    """
    B, K = kps.shape
    H = vec_h[0].shape[1]
    ZIN = W.shape[0]
    G = W.shape[1] // 4

    # Pack state into two lane-dense arrays (4 input DMAs total instead of 18).
    z = jnp.concatenate([kps, vec_h[0], vec_h[1], vec_h[2]], axis=1)
    z = jnp.pad(z, ((0, 0), (0, ZIN - z.shape[1])))
    c = jnp.concatenate([vec_c[0], vec_c[1], vec_c[2]], axis=1)
    c = jnp.pad(c, ((0, 0), (0, G - c.shape[1])))

    out = pl.pallas_call(
        ar_decoder_kernel,
        out_shape=jax.ShapeDtypeStruct((B, 2 * G), jnp.float32),
        in_specs=[_full_spec(z.shape), _full_spec(c.shape),
                  _full_spec(W.shape), _full_spec(b.shape)],
        out_specs=_full_spec((B, 2 * G)),
    )(z, c, W, b)

    h0n = out[:, 0 * H:1 * H]
    h1n = out[:, 1 * H:2 * H]
    h2n = out[:, 2 * H:3 * H]
    c0n = out[:, G + 0 * H:G + 1 * H]
    c1n = out[:, G + 1 * H:G + 2 * H]
    c2n = out[:, G + 2 * H:G + 3 * H]
    return h2n, [h0n, h1n, h2n], [c0n, c1n, c2n]


# ----------------------------------------------------------------------- synth params
def make_params(key, kps_size, hidden):
    """Deterministic synthetic parameters (PyTorch-convention, stored transposed)."""
    ks = jax.random.split(key, 16)
    scale = 0.1
    return {
        "w_emb": scale * jax.random.normal(ks[0], (kps_size, kps_size), jnp.float32),
        "b_emb": scale * jax.random.normal(ks[1], (1, kps_size), jnp.float32),
        "w_ih1": scale * jax.random.normal(ks[2], (kps_size, 4 * hidden), jnp.float32),
        "w_hh1": scale * jax.random.normal(ks[3], (hidden, 4 * hidden), jnp.float32),
        "b1":    scale * jax.random.normal(ks[4], (1, 4 * hidden), jnp.float32),
        "w_ih2": scale * jax.random.normal(ks[5], (hidden, 4 * hidden), jnp.float32),
        "w_hh2": scale * jax.random.normal(ks[6], (hidden, 4 * hidden), jnp.float32),
        "b2":    scale * jax.random.normal(ks[7], (1, 4 * hidden), jnp.float32),
        "w_ih3": scale * jax.random.normal(ks[8], (hidden, 4 * hidden), jnp.float32),
        "w_hh3": scale * jax.random.normal(ks[9], (hidden, 4 * hidden), jnp.float32),
        "b3":    scale * jax.random.normal(ks[10], (1, 4 * hidden), jnp.float32),
    }


def reference_forward(kps, vec_h, vec_c, p):
    """Pure-JAX reference mirroring the PyTorch semantics (for verification)."""
    H = vec_h[0].shape[1]

    def cell(x, h, c, w_ih, w_hh, b):
        g = x @ w_ih + h @ w_hh + b
        i = jax.nn.sigmoid(g[:, 0 * H:1 * H])
        f = jax.nn.sigmoid(g[:, 1 * H:2 * H])
        gg = jnp.tanh(g[:, 2 * H:3 * H])
        o = jax.nn.sigmoid(g[:, 3 * H:4 * H])
        cn = f * c + i * gg
        return o * jnp.tanh(cn), cn

    x = kps @ p["w_emb"] + p["b_emb"]
    h0n, c0n = cell(x, vec_h[0], vec_c[0], p["w_ih1"], p["w_hh1"], p["b1"])
    h1n, c1n = cell(vec_h[0], vec_h[1], vec_c[1], p["w_ih2"], p["w_hh2"], p["b2"])
    h2n, c2n = cell(vec_h[1], vec_h[2], vec_c[2], p["w_ih3"], p["w_hh3"], p["b3"])
    return h2n, [h0n, h1n, h2n], [c0n, c1n, c2n]


if __name__ == "__main__":
    B = 2          # batch
    KPS = 16       # kps_size
    HIDDEN = 32    # d_inner

    key = jax.random.PRNGKey(0)
    k_par, k_kps, k_h, k_c = jax.random.split(key, 4)

    params = make_params(k_par, KPS, HIDDEN)
    W_fused, b_fused = fuse_params(params, KPS, HIDDEN)       # host-side, once

    kps = jax.random.normal(k_kps, (B, KPS), jnp.float32)
    kh = jax.random.split(k_h, 3)
    kc = jax.random.split(k_c, 3)
    vec_h = [jax.random.normal(kh[i], (B, HIDDEN), jnp.float32) for i in range(3)]
    vec_c = [jax.random.normal(kc[i], (B, HIDDEN), jnp.float32) for i in range(3)]

    out_h2, vec_h_new, vec_c_new = ar_decoder_forward(kps, vec_h, vec_c,
                                                      W_fused, b_fused)
    jax.block_until_ready(out_h2)
    jax.block_until_ready(vec_h_new)
    jax.block_until_ready(vec_c_new)

    # Correctness check against pure-JAX reference (unfused math).
    ref_h2, ref_h, ref_c = reference_forward(kps, vec_h, vec_c, params)
    assert jnp.allclose(out_h2, ref_h2, atol=1e-5, rtol=1e-5)
    for a, r in zip(vec_h_new, ref_h):
        assert jnp.allclose(a, r, atol=1e-5, rtol=1e-5)
    for a, r in zip(vec_c_new, ref_c):
        assert jnp.allclose(a, r, atol=1e-5, rtol=1e-5)

    print("KERNEL_OK")
</pallas_src>

<mosaic_0001>
module attributes {stable_mosaic.version = 11 : i64} {
  func.func @ar_decoder_kernel(%arg0: memref<2x128xf32, #tpu.memory_space<vmem>>, %arg1: memref<2x128xf32, #tpu.memory_space<vmem>>, %arg2: memref<128x512xf32, #tpu.memory_space<vmem>>, %arg3: memref<1x512xf32, #tpu.memory_space<vmem>>, %arg4: memref<2x256xf32, #tpu.memory_space<vmem>>) attributes {dimension_semantics = [], scalar_prefetch = 0 : i64, scratch_operands = 0 : i64, tpu.core_type = #tpu.core_type<tc>} {
    %c0 = arith.constant 0 : index
    %c0_0 = arith.constant 0 : index
    %0 = vector.load %arg0[%c0, %c0_0] : memref<2x128xf32, #tpu.memory_space<vmem>>, vector<2x128xf32>
    %c0_1 = arith.constant 0 : index
    %c0_2 = arith.constant 0 : index
    %1 = vector.load %arg2[%c0_1, %c0_2] : memref<128x512xf32, #tpu.memory_space<vmem>>, vector<128x512xf32>
    %cst = arith.constant dense<0.000000e+00> : vector<2x512xf32>
    %2 = tpu.matmul %0, %1, %cst {dimension_numbers = #tpu.dot_dimension_numbers<[1], [0], [0], [1], [0, 0, 1, 1], [], []>} : vector<2x128xf32>, vector<128x512xf32>, vector<2x512xf32> -> vector<2x512xf32>
    %c0_3 = arith.constant 0 : index
    %c0_4 = arith.constant 0 : index
    %3 = vector.load %arg3[%c0_3, %c0_4] : memref<1x512xf32, #tpu.memory_space<vmem>>, vector<1x512xf32>
    %4 = vector.broadcast %3 : vector<1x512xf32> to vector<2x512xf32>
    %5 = arith.addf %2, %4 : vector<2x512xf32>
    %6 = vector.extract_strided_slice %5 {offsets = [0, 0], sizes = [2, 128], strides = [1, 1]} : vector<2x512xf32> to vector<2x128xf32>
    %7 = arith.negf %6 : vector<2x128xf32>
    %8 = math.exp %7 : vector<2x128xf32>
    %cst_5 = arith.constant 1.000000e+00 : f32
    %9 = vector.broadcast %cst_5 : f32 to vector<2x128xf32>
    %10 = arith.addf %9, %8 : vector<2x128xf32>
    %11 = arith.divf %9, %10 : vector<2x128xf32>
    %12 = vector.extract_strided_slice %5 {offsets = [0, 128], sizes = [2, 128], strides = [1, 1]} : vector<2x512xf32> to vector<2x128xf32>
    %13 = arith.negf %12 : vector<2x128xf32>
    %14 = math.exp %13 : vector<2x128xf32>
    %cst_6 = arith.constant 1.000000e+00 : f32
    %15 = vector.broadcast %cst_6 : f32 to vector<2x128xf32>
    %16 = arith.addf %15, %14 : vector<2x128xf32>
    %17 = arith.divf %15, %16 : vector<2x128xf32>
    %18 = vector.extract_strided_slice %5 {offsets = [0, 256], sizes = [2, 128], strides = [1, 1]} : vector<2x512xf32> to vector<2x128xf32>
    %19 = math.tanh %18 : vector<2x128xf32>
    %20 = vector.extract_strided_slice %5 {offsets = [0, 384], sizes = [2, 128], strides = [1, 1]} : vector<2x512xf32> to vector<2x128xf32>
    %21 = arith.negf %20 : vector<2x128xf32>
    %22 = math.exp %21 : vector<2x128xf32>
    %cst_7 = arith.constant 1.000000e+00 : f32
    %23 = vector.broadcast %cst_7 : f32 to vector<2x128xf32>
    %24 = arith.addf %23, %22 : vector<2x128xf32>
    %25 = arith.divf %23, %24 : vector<2x128xf32>
    %c0_8 = arith.constant 0 : index
    %c0_9 = arith.constant 0 : index
    %26 = vector.load %arg1[%c0_8, %c0_9] : memref<2x128xf32, #tpu.memory_space<vmem>>, vector<2x128xf32>
    %27 = arith.mulf %17, %26 : vector<2x128xf32>
    %28 = arith.mulf %11, %19 : vector<2x128xf32>
    %29 = arith.addf %27, %28 : vector<2x128xf32>
    %30 = math.tanh %29 : vector<2x128xf32>
    %31 = arith.mulf %25, %30 : vector<2x128xf32>
    %c0_10 = arith.constant 0 : index
    %c0_11 = arith.constant 0 : index
    %32 = vector.load %arg4[%c0_10, %c0_11] : memref<2x256xf32, #tpu.memory_space<vmem>>, vector<2x128xf32>
    tpu.vector_store %arg4[%c0_10, %c0_11], %31 {strides = array<i32>} : memref<2x256xf32, #tpu.memory_space<vmem>>, vector<2x128xf32>,
    %c0_12 = arith.constant 0 : index
    %c128 = arith.constant 128 : index
    %33 = vector.load %arg4[%c0_12, %c128] : memref<2x256xf32, #tpu.memory_space<vmem>>, vector<2x128xf32>
    tpu.vector_store %arg4[%c0_12, %c128], %29 {strides = array<i32>} : memref<2x256xf32, #tpu.memory_space<vmem>>, vector<2x128xf32>,
    return
  }
}

</mosaic_0001>

<llo_original>
// kernel: ar_decoder_forward.1
$region0: #{ar_decoder_forward.1}
  #allocation0 [shape = 'u32[]', space=smem, size = 0x4, offset = 0x4, fixed_abs, tag = 'smem constant byte address 0x4 - core index']
  #allocation1 [shape = 'u32[144,128]{1,0:T(1,128)}', space=vmem, size = 0x12000, scoped, tag = 'internal scratch']
  %s0 = inlined_call_operand.vmem [shape: f32[2,128], index: 0, kind: input, shape index: {}]
  %s1 = inlined_call_operand.vmem [shape: f32[2,128], index: 1, kind: input, shape index: {}]
  %s2 = inlined_call_operand.hbm [shape: f32[128,512], index: 2, kind: input, shape index: {}]
  %s3 = inlined_call_operand.vmem [shape: f32[1,512], index: 3, kind: input, shape index: {}]
  %s4 = inlined_call_operand.vmem [shape: f32[2,256], index: 4, kind: output, shape index: {}]
  %s5 = sld [smem:[#allocation0]]
  $region30: #{ar_decoder_forward.1} parent=0
    _
  %s7 = ssub.s32 1, %s5
  %s8 = scalar_select 0, %s7, %s5
  $region1: #{ar_decoder_forward.1} parent=0
    #allocation2 [shape = 'u8[262144]{0}', space=vmem, size = 0x40000, scoped, tag = 'input window, operand 2, single buffered']
    #allocation3 [shape = 's32[1]{0}', space=sflag, size = 0x4, scoped, tag = 'scoped memory for ar_decoder_forward.1']
    %9 = vsyncpa [#allocation3], 0
    // Predicated region
    $region2: #{ar_decoder_forward.1} parent=1 // pred_check
      _
    $region3: #{ar_decoder_forward.1} parent=1 // pred_check_branch
      %11 = sbr.rel (0) target = $region5
    $region4: #{ar_decoder_forward.1} parent=1 // pred_region
      _
    $region5: #{ar_decoder_forward.1} parent=1 // pred_fallthru
      _
    // Predicated region
    $region6: #{ar_decoder_forward.1} parent=1 // pred_check
      _
    $region7: #{ar_decoder_forward.1} parent=1 // pred_check_branch
      %13 = sbr.rel (0) target = $region9
    $region8: #{ar_decoder_forward.1} parent=1 // pred_region
      _
    $region9: #{ar_decoder_forward.1} parent=1 // pred_fallthru
      _
    // Predicated region
    $region10: #{ar_decoder_forward.1} parent=1 // pred_check
      _
    $region11: #{ar_decoder_forward.1} parent=1 // pred_check_branch
      %15 = sbr.rel (0) target = $region13
    $region12: #{ar_decoder_forward.1} parent=1 // pred_region
      %s17 = ssub.s32 8192, 8192
      %18 = vsyncadd [#allocation3], %s17
      %s19 = sshll.u32 [#allocation2], 4
      %s20 = int_to_ptr.vmem [resolvable:$true] %s19
      %25 = dma.hbm_to_vmem [thread:$0]  %s2, 8192, %s20, [#allocation3], 512, 512, 32
    $region13: #{ar_decoder_forward.1} parent=1 // pred_fallthru
      _
    // Predicated region
    $region14: #{ar_decoder_forward.1} parent=1 // pred_check
      _
    $region15: #{ar_decoder_forward.1} parent=1 // pred_check_branch
      %27 = sbr.rel (0) target = $region17
    $region16: #{ar_decoder_forward.1} parent=1 // pred_region
      _
    $region17: #{ar_decoder_forward.1} parent=1 // pred_fallthru
      _
    // Predicated region
    $region18: #{ar_decoder_forward.1} parent=1 // pred_check
      _
    $region19: #{ar_decoder_forward.1} parent=1 // pred_check_branch
      %29 = sbr.rel (0) target = $region21
    $region20: #{ar_decoder_forward.1} parent=1 // pred_region
      %30 = dma.done [#allocation3], 8192
    $region21: #{ar_decoder_forward.1} parent=1 // pred_fallthru
      _
    %v31 = vld [vmem:[%s0] sm:$0x3]
    %v32 = vld [vmem:[#allocation2] sm:$0xff]
    %v33 = vld [vmem:[#allocation2 + $0x8] sm:$0xff]
    %v34 = vld [vmem:[#allocation2 + $0x10] sm:$0xff]
    %v35 = vld [vmem:[#allocation2 + $0x18] sm:$0xff]
    %v36 = vld [vmem:[#allocation2 + $0x20] sm:$0xff]
    %v37 = vld [vmem:[#allocation2 + $0x28] sm:$0xff]
    %v38 = vld [vmem:[#allocation2 + $0x30] sm:$0xff]
    %v39 = vld [vmem:[#allocation2 + $0x38] sm:$0xff]
    %v40 = vld [vmem:[#allocation2 + $0x40] sm:$0xff]
    %v41 = vld [vmem:[#allocation2 + $0x48] sm:$0xff]
    %v42 = vld [vmem:[#allocation2 + $0x50] sm:$0xff]
    %v43 = vld [vmem:[#allocation2 + $0x58] sm:$0xff]
    %v44 = vld [vmem:[#allocation2 + $0x60] sm:$0xff]
    %v45 = vld [vmem:[#allocation2 + $0x68] sm:$0xff]
    %v46 = vld [vmem:[#allocation2 + $0x70] sm:$0xff]
    %v47 = vld [vmem:[#allocation2 + $0x78] sm:$0xff]
    %v48 = vld [vmem:[#allocation2 + $0x80] sm:$0xff]
    %v49 = vld [vmem:[#allocation2 + $0x88] sm:$0xff]
    %v50 = vld [vmem:[#allocation2 + $0x90] sm:$0xff]
    %v51 = vld [vmem:[#allocation2 + $0x98] sm:$0xff]
    %v52 = vld [vmem:[#allocation2 + $0xa0] sm:$0xff]
    %v53 = vld [vmem:[#allocation2 + $0xa8] sm:$0xff]
    %v54 = vld [vmem:[#allocation2 + $0xb0] sm:$0xff]
    %v55 = vld [vmem:[#allocation2 + $0xb8] sm:$0xff]
    %v56 = vld [vmem:[#allocation2 + $0xc0] sm:$0xff]
    %v57 = vld [vmem:[#allocation2 + $0xc8] sm:$0xff]
    %v58 = vld [vmem:[#allocation2 + $0xd0] sm:$0xff]
    %v59 = vld [vmem:[#allocation2 + $0xd8] sm:$0xff]
    %v60 = vld [vmem:[#allocation2 + $0xe0] sm:$0xff]
    %v61 = vld [vmem:[#allocation2 + $0xe8] sm:$0xff]
    %v62 = vld [vmem:[#allocation2 + $0xf0] sm:$0xff]
    %v63 = vld [vmem:[#allocation2 + $0xf8] sm:$0xff]
    %v64 = vld [vmem:[#allocation2 + $0x100] sm:$0xff]
    %v65 = vld [vmem:[#allocation2 + $0x108] sm:$0xff]
    %v66 = vld [vmem:[#allocation2 + $0x110] sm:$0xff]
    %v67 = vld [vmem:[#allocation2 + $0x118] sm:$0xff]
    %v68 = vld [vmem:[#allocation2 + $0x120] sm:$0xff]
    %v69 = vld [vmem:[#allocation2 + $0x128] sm:$0xff]
    %v70 = vld [vmem:[#allocation2 + $0x130] sm:$0xff]
    %v71 = vld [vmem:[#allocation2 + $0x138] sm:$0xff]
    %v72 = vld [vmem:[#allocation2 + $0x140] sm:$0xff]
    %v73 = vld [vmem:[#allocation2 + $0x148] sm:$0xff]
    %v74 = vld [vmem:[#allocation2 + $0x150] sm:$0xff]
    %v75 = vld [vmem:[#allocation2 + $0x158] sm:$0xff]
    %v76 = vld [vmem:[#allocation2 + $0x160] sm:$0xff]
    %v77 = vld [vmem:[#allocation2 + $0x168] sm:$0xff]
    %v78 = vld [vmem:[#allocation2 + $0x170] sm:$0xff]
    %v79 = vld [vmem:[#allocation2 + $0x178] sm:$0xff]
    %v80 = vld [vmem:[#allocation2 + $0x180] sm:$0xff]
    %v81 = vld [vmem:[#allocation2 + $0x188] sm:$0xff]
    %v82 = vld [vmem:[#allocation2 + $0x190] sm:$0xff]
    %v83 = vld [vmem:[#allocation2 + $0x198] sm:$0xff]
    %v84 = vld [vmem:[#allocation2 + $0x1a0] sm:$0xff]
    %v85 = vld [vmem:[#allocation2 + $0x1a8] sm:$0xff]
    %v86 = vld [vmem:[#allocation2 + $0x1b0] sm:$0xff]
    %v87 = vld [vmem:[#allocation2 + $0x1b8] sm:$0xff]
    %v88 = vld [vmem:[#allocation2 + $0x1c0] sm:$0xff]
    %v89 = vld [vmem:[#allocation2 + $0x1c8] sm:$0xff]
    %v90 = vld [vmem:[#allocation2 + $0x1d0] sm:$0xff]
    %v91 = vld [vmem:[#allocation2 + $0x1d8] sm:$0xff]
    %v92 = vld [vmem:[#allocation2 + $0x1e0] sm:$0xff]
    %v93 = vld [vmem:[#allocation2 + $0x1e8] sm:$0xff]
    %v94 = vld [vmem:[#allocation2 + $0x1f0] sm:$0xff]
    %v95 = vld [vmem:[#allocation2 + $0x1f8] sm:$0xff]
    %v96 = vld [vmem:[%s3] sm:$0xf]
    %v98 = vlaneseq
    %v99 = vshrl.u32 %v98, 7
    %v100 = vsub.s32 0, %v99
    %v101 = vrot.slane %v96, %v100
    %v102 = vlaneseq
    %v103 = vshrl.u32 %v102, 7
    %v104 = vsub.s32 1, %v103
    %v105 = vrot.slane %v96, %v104
    %v106 = vlaneseq
    %v107 = vshrl.u32 %v106, 7
    %v108 = vsub.s32 2, %v107
    %v109 = vrot.slane %v96, %v108
    %v110 = vlaneseq
    %v111 = vshrl.u32 %v110, 7
    %v112 = vsub.s32 3, %v111
    %v113 = vrot.slane %v96, %v112
    %118 = vmatprep.subr.mxu0 %v33
    %119 = vmatpush1.msra.mxu0 %v32
    %120 = vmatprep.subr.mxu0 %v37
    %121 = vmatpush1.msra.mxu0 %v36
    %122 = vmatprep.subr.mxu0 %v41
    %123 = vmatpush1.msra.mxu0 %v40
    %124 = vmatprep.subr.mxu0 %v45
    %125 = vmatpush1.msra.mxu0 %v44
    %126 = vmatprep.subr.mxu0 %v49
    %127 = vmatpush1.msra.mxu0 %v48
    %128 = vmatprep.subr.mxu0 %v53
    %129 = vmatpush1.msra.mxu0 %v52
    %130 = vmatprep.subr.mxu0 %v57
    %131 = vmatpush1.msra.mxu0 %v56
    %132 = vmatprep.subr.mxu0 %v61
    %133 = vmatpush1.msra.mxu0 %v60
    %134 = vmatprep.subr.mxu0 %v65
    %135 = vmatpush1.msra.mxu0 %v64
    %136 = vmatprep.subr.mxu0 %v69
    %137 = vmatpush1.msra.mxu0 %v68
    %138 = vmatprep.subr.mxu0 %v73
    %139 = vmatpush1.msra.mxu0 %v72
    %140 = vmatprep.subr.mxu0 %v77
    %141 = vmatpush1.msra.mxu0 %v76
    %142 = vmatprep.subr.mxu0 %v81
    %143 = vmatpush1.msra.mxu0 %v80
    %144 = vmatprep.subr.mxu0 %v85
    %145 = vmatpush1.msra.mxu0 %v84
    %146 = vmatprep.subr.mxu0 %v89
    %147 = vmatpush1.msra.mxu0 %v88
    %148 = vmatprep.subr.mxu0 %v93
    %149 = vmatpush1.msra.mxu0 %v92
    %150 = vmatprep.subr.mxu0 0.0
    %151 = vmatpush1.msra.mxu0 0.0
    %152 = vmatprep.subr.mxu0 0.0
    %153 = vmatpush1.msra.mxu0 0.0
    %154 = vmatprep.subr.mxu0 0.0
    %155 = vmatpush1.msra.mxu0 0.0
    %156 = vmatprep.subr.mxu0 0.0
    %157 = vmatpush1.msra.mxu0 0.0
    %158 = vmatprep.subr.mxu0 0.0
    %159 = vmatpush1.msra.mxu0 0.0
    %160 = vmatprep.subr.mxu0 0.0
    %161 = vmatpush1.msra.mxu0 0.0
    %162 = vmatprep.subr.mxu0 0.0
    %163 = vmatpush1.msra.mxu0 0.0
    %164 = vmatprep.subr.mxu0 0.0
    %165 = vmatpush1.msra.mxu0 0.0
    %166 = vmatprep.subr.mxu0 0.0
    %167 = vmatpush1.msra.mxu0 0.0
    %168 = vmatprep.subr.mxu0 0.0
    %169 = vmatpush1.msra.mxu0 0.0
    %170 = vmatprep.subr.mxu0 0.0
    %171 = vmatpush1.msra.mxu0 0.0
    %172 = vmatprep.subr.mxu0 0.0
    %173 = vmatpush1.msra.mxu0 0.0
    %174 = vmatprep.subr.mxu0 0.0
    %175 = vmatpush1.msra.mxu0 0.0
    %176 = vmatprep.subr.mxu0 0.0
    %177 = vmatpush1.msra.mxu0 0.0
    %178 = vmatprep.subr.mxu0 0.0
    %179 = vmatpush1.msra.mxu0 0.0
    %180 = vmatprep.subr.mxu0 0.0
    %181 = vmatpush1.msra.mxu0 0.0
    %182 = vmatprep.mubr.f32.mxu0 0.0
    %183 = vmatmul.mubr.f32.gmra.mrb[0].mxu0 %v31
    %v184 = vpop.f32.mrb[0].mxu0
    %v185 = vadd.f32 %v101, %v184
    %v186 = vpop.f32.mrb[0].mxu0
    %v187 = vadd.f32 %v105, %v186
    %188 = vdwg.mxu0
    %189 = vmatprep.subr.mxu0 %v35
    %190 = vmatpush1.msra.mxu0 %v34
    %191 = vmatprep.subr.mxu0 %v39
    %192 = vmatpush1.msra.mxu0 %v38
    %193 = vmatprep.subr.mxu0 %v43
    %194 = vmatpush1.msra.mxu0 %v42
    %195 = vmatprep.subr.mxu0 %v47
    %196 = vmatpush1.msra.mxu0 %v46
    %197 = vmatprep.subr.mxu0 %v51
    %198 = vmatpush1.msra.mxu0 %v50
    %199 = vmatprep.subr.mxu0 %v55
    %200 = vmatpush1.msra.mxu0 %v54
    %201 = vmatprep.subr.mxu0 %v59
    %202 = vmatpush1.msra.mxu0 %v58
    %203 = vmatprep.subr.mxu0 %v63
    %204 = vmatpush1.msra.mxu0 %v62
    %205 = vmatprep.subr.mxu0 %v67
    %206 = vmatpush1.msra.mxu0 %v66
    %207 = vmatprep.subr.mxu0 %v71
    %208 = vmatpush1.msra.mxu0 %v70
    %209 = vmatprep.subr.mxu0 %v75
    %210 = vmatpush1.msra.mxu0 %v74
    %211 = vmatprep.subr.mxu0 %v79
    %212 = vmatpush1.msra.mxu0 %v78
    %213 = vmatprep.subr.mxu0 %v83
    %214 = vmatpush1.msra.mxu0 %v82
    %215 = vmatprep.subr.mxu0 %v87
    %216 = vmatpush1.msra.mxu0 %v86
    %217 = vmatprep.subr.mxu0 %v91
    %218 = vmatpush1.msra.mxu0 %v90
    %219 = vmatprep.subr.mxu0 %v95
    %220 = vmatpush1.msra.mxu0 %v94
    %221 = vmatprep.subr.mxu0 0.0
    %222 = vmatpush1.msra.mxu0 0.0
    %223 = vmatprep.subr.mxu0 0.0
    %224 = vmatpush1.msra.mxu0 0.0
    %225 = vmatprep.subr.mxu0 0.0
    %226 = vmatpush1.msra.mxu0 0.0
    %227 = vmatprep.subr.mxu0 0.0
    %228 = vmatpush1.msra.mxu0 0.0
    %229 = vmatprep.subr.mxu0 0.0
    %230 = vmatpush1.msra.mxu0 0.0
    %231 = vmatprep.subr.mxu0 0.0
    %232 = vmatpush1.msra.mxu0 0.0
    %233 = vmatprep.subr.mxu0 0.0
    %234 = vmatpush1.msra.mxu0 0.0
    %235 = vmatprep.subr.mxu0 0.0
    %236 = vmatpush1.msra.mxu0 0.0
    %237 = vmatprep.subr.mxu0 0.0
    %238 = vmatpush1.msra.mxu0 0.0
    %239 = vmatprep.subr.mxu0 0.0
    %240 = vmatpush1.msra.mxu0 0.0
    %241 = vmatprep.subr.mxu0 0.0
    %242 = vmatpush1.msra.mxu0 0.0
    %243 = vmatprep.subr.mxu0 0.0
    %244 = vmatpush1.msra.mxu0 0.0
    %245 = vmatprep.subr.mxu0 0.0
    %246 = vmatpush1.msra.mxu0 0.0
    %247 = vmatprep.subr.mxu0 0.0
    %248 = vmatpush1.msra.mxu0 0.0
    %249 = vmatprep.subr.mxu0 0.0
    %250 = vmatpush1.msra.mxu0 0.0
    %251 = vmatprep.subr.mxu0 0.0
    %252 = vmatpush1.msra.mxu0 0.0
    %253 = vmatprep.mubr.f32.mxu0 0.0
    %254 = vmatmul.mubr.f32.gmra.mrb[0].mxu0 %v31
    %v255 = vpop.f32.mrb[0].mxu0
    %v256 = vadd.f32 %v109, %v255
    %v257 = vpop.f32.mrb[0].mxu0
    %v258 = vadd.f32 %v113, %v257
    %259 = vdwg.mxu0
    %v260 = vxor.u32 %v185, 2147483648
    %v261 = vmul.f32 %v260, 1.442695
    %v262 = vpow.pop %v261
    %v263 = vadd.f32 %v262, 1.0
    %v264 = vrcp.pop %v263
    %v265 = vmul.f32 1.0, %v264
    %v266 = vxor.u32 %v187, 2147483648
    %v267 = vmul.f32 %v266, 1.442695
    %v268 = vpow.pop %v267
    %v269 = vadd.f32 %v268, 1.0
    %v270 = vrcp.pop %v269
    %v271 = vmul.f32 1.0, %v270
    %v272 = vtanh.pop %v256
    %v273 = vxor.u32 %v258, 2147483648
    %v274 = vmul.f32 %v273, 1.442695
    %v275 = vpow.pop %v274
    %v276 = vadd.f32 %v275, 1.0
    %v277 = vrcp.pop %v276
    %v278 = vmul.f32 1.0, %v277
    %v279 = vld [vmem:[%s1] sm:$0x3]
    %v280 = vmul.f32 %v271, %v279
    %v281 = vmul.f32 %v265, %v272
    %v282 = vadd.f32 %v280, %v281
    %v283 = vtanh.pop %v282
    %v284 = vmul.f32 %v278, %v283
    %285 = vst [vmem:[%s4] sm:$0x3] %v284
    %286 = vst [vmem:[%s4 + $0x2] sm:$0x3] %v282
    // Predicated region
    $region22: #{ar_decoder_forward.1} parent=1 // pred_check
      _
    $region23: #{ar_decoder_forward.1} parent=1 // pred_check_branch
      %288 = sbr.rel (0) target = $region25
    $region24: #{ar_decoder_forward.1} parent=1 // pred_region
      _
    $region25: #{ar_decoder_forward.1} parent=1 // pred_fallthru
      _
    // Predicated region
    $region26: #{ar_decoder_forward.1} parent=1 // pred_check
      _
    $region27: #{ar_decoder_forward.1} parent=1 // pred_check_branch
      %290 = sbr.rel (0) target = $region29
    $region28: #{ar_decoder_forward.1} parent=1 // pred_region
      _
    $region29: #{ar_decoder_forward.1} parent=1 // pred_fallthru
      _
    %291 = vsyncpa [#allocation3], 1

</llo_original>
